<compile_context>
chip_gen: v5e
topology: v5e:2x2
jax: 0.10.0
libtpu: 0.0.40
codegen_flags: <defaults>
</compile_context>

<pallas_src>
import functools

import jax
import jax.numpy as jnp
from jax.experimental import pallas as pl
from jax.experimental.pallas import tpu as pltpu


def _round_up(x, m):
    return (x + m - 1) // m * m


def _cdiv(a, b):
    return (a + b - 1) // b


def _vmem_capacity_bytes(default=64 * 1024 * 1024):
    """Physical VMEM per core; falls back to the smallest (v7x) if unknown."""
    try:
        info = pltpu.get_tpu_info()
        cap = getattr(info, "vmem_capacity_bytes", None)
        if cap:
            return int(cap)
    except Exception:
        pass
    return default


def _generator_kernel(x_ref, w_ref, b_ref, o_ref, m_ref, l_ref, *, v_valid):
    # x_ref: (TM, H) native dtype   w_ref: (H, TN)   b_ref: (1, TN)
    # o_ref: (TM, Vp), resident across the vocab grid axis
    # m_ref/l_ref: (TM, 1) f32 scratch -- online log-sum-exp state
    # v_valid: true vocab size if Vp > V (static), else None (no padded lanes)
    j = pl.program_id(1)
    nj = pl.num_programs(1)
    tn = w_ref.shape[1]
    vp = o_ref.shape[-1]

    @pl.when(j == 0)
    def _init():
        m_ref[...] = jnp.full_like(m_ref, -jnp.inf)
        l_ref[...] = jnp.zeros_like(l_ref)

    # MXU matmul: native-dtype tiles in, f32 accumulation out.
    logits = jnp.dot(x_ref[...], w_ref[...], preferred_element_type=jnp.float32)
    logits = logits + b_ref[...].astype(jnp.float32)

    if v_valid is not None:
        # Mask padded vocab lanes to -inf so they never enter max / sum.
        # Only the last tile actually has padded lanes; for earlier tiles the
        # compare is uniformly true (cheap VPU select).
        lane = jax.lax.broadcasted_iota(jnp.int32, logits.shape, 1)
        col = j * tn + lane
        logits = jnp.where(col < v_valid, logits, -jnp.inf)

    # Online log-sum-exp update (all f32).
    m_prev = m_ref[...]
    m_new = jnp.maximum(m_prev, jnp.max(logits, axis=-1, keepdims=True))
    l_ref[...] = (l_ref[...] * jnp.exp(m_prev - m_new)
                  + jnp.sum(jnp.exp(logits - m_new), axis=-1, keepdims=True))
    m_ref[...] = m_new

    # Stash raw logits into the resident full-Vp output row block.
    if tn == vp:
        o_ref[...] = logits.astype(o_ref.dtype)
    else:
        # tn is a multiple of 128 by construction -> aligned lane-dim store.
        start = pl.multiple_of(j * tn, tn)
        o_ref[:, pl.ds(start, tn)] = logits.astype(o_ref.dtype)

    # Finalize once every vocab tile has been folded into (m, l).
    @pl.when(j == nj - 1)
    def _finalize():
        lse = m_ref[...] + jnp.log(l_ref[...])
        o_ref[...] = (o_ref[...].astype(jnp.float32) - lse).astype(o_ref.dtype)


def generator_forward(x, w_hv, b_2d, *, out_dtype=jnp.float32, tm=None, tn=None):
    """log_softmax(x @ W + b, axis=-1) with a tiled Pallas TPU kernel.

    x:    (B, H)
    w_hv: (H, V)  projection weight already in (hidden, vocab) layout
                  (transposed ONCE at init, never per forward call).
    b_2d: (1, V)
    out_dtype: jnp.float32 (exact) or jnp.bfloat16 (halves the resident output
               block and writeback; stashed logits are bf16-rounded).
    """
    B, H = x.shape
    Hw, V = w_hv.shape
    assert Hw == H and b_2d.shape == (1, V)

    x_it = jnp.dtype(x.dtype).itemsize
    w_it = jnp.dtype(w_hv.dtype).itemsize
    b_it = jnp.dtype(b_2d.dtype).itemsize
    o_it = jnp.dtype(out_dtype).itemsize

    phys_vmem = _vmem_capacity_bytes()
    usable = int(phys_vmem * 0.80)     # leave headroom for compiler scratch

    # ---- Vocab tile: budgeted from H and the weight dtype. --------------
    # The weight tile is double-buffered by the pipeline: 2 * H * tn * itemsize.
    # ~512+ lanes already reaches ~85% of HBM roofline, so no hardcoded list.
    if tn is None:
        w_budget = usable // 3
        tn = w_budget // (2 * H * w_it)
        tn = min(tn, 2048, _round_up(V, 128))
        tn = max(128, (tn // 128) * 128)
    assert tn % 128 == 0 and tn >= 128

    # Pad V up to a multiple of tn (masked to -inf in-kernel, sliced off below).
    Vp = _round_up(V, tn)

    # ---- Batch tile: whatever the remaining VMEM allows, balanced over B. --
    # The (tm, Vp) output row block is double-buffered across batch tiles, so
    # it costs 2*tm*Vp*o_it -- the dominant VMEM consumer.  Larger tm also
    # means fewer full (H, Vp) weight re-streams (the HBM-bound regime), so
    # take the largest tm the budget allows, then balance so the last batch
    # tile is mostly real rows.
    if tm is None:
        fixed = 2 * H * tn * w_it + 2 * tn * b_it + (64 << 10)
        per_row = 2 * Vp * o_it + 2 * H * x_it + 16   # output + x + (m,l) scratch
        tm_cap = (usable - fixed) // per_row
        tm_cap = max(8, min(512, (tm_cap // 8) * 8))
        n_bt = _cdiv(B, tm_cap)
        tm = min(tm_cap, _round_up(_cdiv(B, n_bt), 8))
    assert tm % 8 == 0 and tm >= 8

    Bp = _round_up(B, tm)
    if Bp != B:
        # Zero-padded rows are independent of real rows and sliced off below.
        x = jnp.pad(x, ((0, Bp - B), (0, 0)))
    if Vp != V:
        # In real usage pad the parameters once at init; done here so the
        # wrapper stays self-contained.
        w_hv = jnp.pad(w_hv, ((0, 0), (0, Vp - V)))
        b_2d = jnp.pad(b_2d, ((0, 0), (0, Vp - V)))

    n_bt = Bp // tm
    nj = Vp // tn
    grid = (n_bt, nj)

    kernel = functools.partial(_generator_kernel,
                               v_valid=(V if Vp != V else None))

    # The weight (and bias) stream repeats once per BATCH tile (their
    # index_map depends only on j); x is read once; output written once.
    cost = pl.CostEstimate(
        flops=2 * Bp * H * Vp,
        transcendentals=Bp * Vp + Bp * nj + Bp,   # exp per logit + per-tile rescale + log
        bytes_accessed=(n_bt * (H * Vp * w_it + Vp * b_it)
                        + Bp * H * x_it
                        + Bp * Vp * o_it),
    )

    vmem_limit = int(phys_vmem * 0.85)

    out = pl.pallas_call(
        kernel,
        out_shape=jax.ShapeDtypeStruct((Bp, Vp), out_dtype),
        grid_spec=pltpu.PrefetchScalarGridSpec(
            num_scalar_prefetch=0,
            grid=grid,
            in_specs=[
                pl.BlockSpec((tm, H), lambda i, j: (i, 0)),   # x tile
                pl.BlockSpec((H, tn), lambda i, j: (0, j)),   # streamed weight tile
                pl.BlockSpec((1, tn), lambda i, j: (0, j)),   # bias tile
            ],
            # Full-Vp output row block resident across the vocab axis (same
            # block index for every j) -> written back to HBM once per batch tile.
            out_specs=pl.BlockSpec((tm, Vp), lambda i, j: (i, 0)),
            scratch_shapes=[
                pltpu.VMEM((tm, 1), jnp.float32),   # running max m
                pltpu.VMEM((tm, 1), jnp.float32),   # running sum l
            ],
        ),
        compiler_params=pltpu.CompilerParams(
            dimension_semantics=("parallel", "arbitrary"),
            vmem_limit_bytes=vmem_limit,
        ),
        cost_estimate=cost,
    )(x, w_hv, b_2d)

    if Bp != B or Vp != V:
        out = out[:B, :V]
    return out


def _reference(x, weight_vh, bias):
    logits = x @ weight_vh.T + bias
    return jax.nn.log_softmax(logits, axis=1)


if __name__ == "__main__":
    def make_case(key, hidden_size, vocab_size, batch):
        kx, kw, kb = jax.random.split(key, 3)
        # Deterministic init mimicking nn.Linear's U(-1/sqrt(H), 1/sqrt(H)).
        bound = 1.0 / jnp.sqrt(jnp.float32(hidden_size))
        weight = jax.random.uniform(kw, (vocab_size, hidden_size),
                                    minval=-bound, maxval=bound, dtype=jnp.float32)
        bias = jax.random.uniform(kb, (vocab_size,),
                                  minval=-bound, maxval=bound, dtype=jnp.float32)
        x = jax.random.normal(kx, (batch, hidden_size), dtype=jnp.float32)
        return x, weight, bias

    key = jax.random.PRNGKey(0)
    k1, k2, k3 = jax.random.split(key, 3)

    # (key, H, V, B, forced_tm, forced_tn) -- small shapes exercising:
    #   1) aligned single-tile path (V multiple of 128),
    #   2) vocab padding + in-kernel -inf masking (V=200 -> Vp=256),
    #   3) multiple batch tiles + multiple vocab tiles (online LSE across
    #      tiles, dynamic-slice stores, masking on the last vocab tile).
    cases = [
        (k1, 32, 128, 8, None, None),
        (k2, 32, 200, 5, None, None),
        (k3, 32, 500, 20, 8, 128),
    ]

    for kk, H, V, B, f_tm, f_tn in cases:
        x, weight, bias = make_case(kk, H, V, B)

        # Init-time parameter layout prep (done once, NOT per forward call).
        w_hv = jnp.asarray(weight.T)        # (H, V)
        b_2d = bias.reshape(1, V)           # (1, V)

        out = generator_forward(x, w_hv, b_2d, tm=f_tm, tn=f_tn)
        out = jax.block_until_ready(out)

        ref = _reference(x, weight, bias)
        assert out.shape == (B, V), (out.shape, (B, V))
        assert jnp.allclose(out, ref, atol=2e-5, rtol=2e-5), (H, V, B)

    print("KERNEL_OK")
</pallas_src>

<mosaic_0001>
module attributes {stable_mosaic.version = 11 : i64} {
  func.func @_generator_kernel(%arg0: i32, %arg1: i32, %arg2: memref<8x32xf32, #tpu.memory_space<vmem>>, %arg3: memref<32x128xf32, #tpu.memory_space<vmem>>, %arg4: memref<1x128xf32, #tpu.memory_space<vmem>>, %arg5: memref<8x128xf32, #tpu.memory_space<vmem>>, %arg6: memref<8x1xf32, #tpu.memory_space<vmem>>, %arg7: memref<8x1xf32, #tpu.memory_space<vmem>>) attributes {dimension_semantics = [#tpu.dimension_semantics<parallel>, #tpu.dimension_semantics<arbitrary>], iteration_bounds = array<i64: 1, 1>, scalar_prefetch = 0 : i64, scratch_operands = 2 : i64, tpu.core_type = #tpu.core_type<tc>, window_params = [{transform_indices = @transform_0, window_bounds = array<i64: 8, 32>}, {transform_indices = @transform_1, window_bounds = array<i64: 32, 128>}, {transform_indices = @transform_2, window_bounds = array<i64: 1, 128>}, {transform_indices = @transform_3, window_bounds = array<i64: 8, 128>}]} {
    %c0_i32 = arith.constant 0 : i32
    %0 = arith.cmpi eq, %arg1, %c0_i32 : i32
    %1 = arith.extui %0 : i1 to i32
    %c0_i32_0 = arith.constant 0 : i32
    %2 = arith.cmpi ne, %1, %c0_i32_0 : i32
    scf.if %2 {
      %cst_20 = arith.constant 0xFF800000 : f32
      %29 = vector.broadcast %cst_20 : f32 to vector<8x1xf32>
      %c0_21 = arith.constant 0 : index
      %c0_22 = arith.constant 0 : index
      %30 = vector.load %arg6[%c0_21, %c0_22] : memref<8x1xf32, #tpu.memory_space<vmem>>, vector<8x1xf32>
      tpu.vector_store %arg6[%c0_21, %c0_22], %29 {strides = array<i32>} : memref<8x1xf32, #tpu.memory_space<vmem>>, vector<8x1xf32>,
      %cst_23 = arith.constant 0.000000e+00 : f32
      %31 = vector.broadcast %cst_23 : f32 to vector<8x1xf32>
      %c0_24 = arith.constant 0 : index
      %c0_25 = arith.constant 0 : index
      %32 = vector.load %arg7[%c0_24, %c0_25] : memref<8x1xf32, #tpu.memory_space<vmem>>, vector<8x1xf32>
      tpu.vector_store %arg7[%c0_24, %c0_25], %31 {strides = array<i32>} : memref<8x1xf32, #tpu.memory_space<vmem>>, vector<8x1xf32>,
    } else {
    }
    %c0 = arith.constant 0 : index
    %c0_1 = arith.constant 0 : index
    %3 = vector.load %arg2[%c0, %c0_1] : memref<8x32xf32, #tpu.memory_space<vmem>>, vector<8x32xf32>
    %c0_2 = arith.constant 0 : index
    %c0_3 = arith.constant 0 : index
    %4 = vector.load %arg3[%c0_2, %c0_3] : memref<32x128xf32, #tpu.memory_space<vmem>>, vector<32x128xf32>
    %cst = arith.constant dense<0.000000e+00> : vector<8x128xf32>
    %5 = tpu.matmul %3, %4, %cst {dimension_numbers = #tpu.dot_dimension_numbers<[1], [0], [0], [1], [0, 0, 1, 1], [], []>} : vector<8x32xf32>, vector<32x128xf32>, vector<8x128xf32> -> vector<8x128xf32>
    %c0_4 = arith.constant 0 : index
    %c0_5 = arith.constant 0 : index
    %6 = vector.load %arg4[%c0_4, %c0_5] : memref<1x128xf32, #tpu.memory_space<vmem>>, vector<1x128xf32>
    %7 = vector.broadcast %6 : vector<1x128xf32> to vector<8x128xf32>
    %8 = arith.addf %5, %7 : vector<8x128xf32>
    %c0_6 = arith.constant 0 : index
    %c0_7 = arith.constant 0 : index
    %9 = vector.load %arg6[%c0_6, %c0_7] : memref<8x1xf32, #tpu.memory_space<vmem>>, vector<8x1xf32>
    %cst_8 = arith.constant dense<0xFF800000> : vector<8xf32>
    %10 = vector.multi_reduction <maximumf>, %8, %cst_8 [1] : vector<8x128xf32> to vector<8xf32>
    %11 = vector.shape_cast %10 : vector<8xf32> to vector<8x1xf32>
    %12 = arith.maximumf %9, %11 : vector<8x1xf32>
    %c0_9 = arith.constant 0 : index
    %c0_10 = arith.constant 0 : index
    %13 = vector.load %arg7[%c0_9, %c0_10] : memref<8x1xf32, #tpu.memory_space<vmem>>, vector<8x1xf32>
    %14 = arith.subf %9, %12 : vector<8x1xf32>
    %15 = math.exp %14 : vector<8x1xf32>
    %16 = arith.mulf %13, %15 : vector<8x1xf32>
    %17 = vector.broadcast %12 : vector<8x1xf32> to vector<8x128xf32>
    %18 = arith.subf %8, %17 : vector<8x128xf32>
    %19 = math.exp %18 : vector<8x128xf32>
    %cst_11 = arith.constant dense<0.000000e+00> : vector<8xf32>
    %20 = vector.multi_reduction <add>, %19, %cst_11 [1] : vector<8x128xf32> to vector<8xf32>
    %21 = vector.shape_cast %20 : vector<8xf32> to vector<8x1xf32>
    %22 = arith.addf %16, %21 : vector<8x1xf32>
    %c0_12 = arith.constant 0 : index
    %c0_13 = arith.constant 0 : index
    %23 = vector.load %arg7[%c0_12, %c0_13] : memref<8x1xf32, #tpu.memory_space<vmem>>, vector<8x1xf32>
    tpu.vector_store %arg7[%c0_12, %c0_13], %22 {strides = array<i32>} : memref<8x1xf32, #tpu.memory_space<vmem>>, vector<8x1xf32>,
    %c0_14 = arith.constant 0 : index
    %c0_15 = arith.constant 0 : index
    %24 = vector.load %arg6[%c0_14, %c0_15] : memref<8x1xf32, #tpu.memory_space<vmem>>, vector<8x1xf32>
    tpu.vector_store %arg6[%c0_14, %c0_15], %12 {strides = array<i32>} : memref<8x1xf32, #tpu.memory_space<vmem>>, vector<8x1xf32>,
    %c0_16 = arith.constant 0 : index
    %c0_17 = arith.constant 0 : index
    %25 = vector.load %arg5[%c0_16, %c0_17] : memref<8x128xf32, #tpu.memory_space<vmem>>, vector<8x128xf32>
    tpu.vector_store %arg5[%c0_16, %c0_17], %8 {strides = array<i32>} : memref<8x128xf32, #tpu.memory_space<vmem>>, vector<8x128xf32>,
    %c0_i32_18 = arith.constant 0 : i32
    %26 = arith.cmpi eq, %arg1, %c0_i32_18 : i32
    %27 = arith.extui %26 : i1 to i32
    %c0_i32_19 = arith.constant 0 : i32
    %28 = arith.cmpi ne, %27, %c0_i32_19 : i32
    scf.if %28 {
      %c0_20 = arith.constant 0 : index
      %c0_21 = arith.constant 0 : index
      %29 = vector.load %arg6[%c0_20, %c0_21] : memref<8x1xf32, #tpu.memory_space<vmem>>, vector<8x1xf32>
      %c0_22 = arith.constant 0 : index
      %c0_23 = arith.constant 0 : index
      %30 = vector.load %arg7[%c0_22, %c0_23] : memref<8x1xf32, #tpu.memory_space<vmem>>, vector<8x1xf32>
      %31 = math.log %30 : vector<8x1xf32>
      %32 = arith.addf %29, %31 : vector<8x1xf32>
      %c0_24 = arith.constant 0 : index
      %c0_25 = arith.constant 0 : index
      %33 = vector.load %arg5[%c0_24, %c0_25] : memref<8x128xf32, #tpu.memory_space<vmem>>, vector<8x128xf32>
      %34 = vector.broadcast %32 : vector<8x1xf32> to vector<8x128xf32>
      %35 = arith.subf %33, %34 : vector<8x128xf32>
      %c0_26 = arith.constant 0 : index
      %c0_27 = arith.constant 0 : index
      %36 = vector.load %arg5[%c0_26, %c0_27] : memref<8x128xf32, #tpu.memory_space<vmem>>, vector<8x128xf32>
      tpu.vector_store %arg5[%c0_26, %c0_27], %35 {strides = array<i32>} : memref<8x128xf32, #tpu.memory_space<vmem>>, vector<8x128xf32>,
    } else {
    }
    return
  }
  func.func @transform_0(%arg0: i32, %arg1: i32) -> (i32, i32) {
    %c0_i32 = arith.constant 0 : i32
    %c0_i32_0 = arith.constant 0 : i32
    return %arg0, %c0_i32 : i32, i32
  }
  func.func @transform_1(%arg0: i32, %arg1: i32) -> (i32, i32) {
    %c0_i32 = arith.constant 0 : i32
    %c0_i32_0 = arith.constant 0 : i32
    return %c0_i32, %arg1 : i32, i32
  }
  func.func @transform_2(%arg0: i32, %arg1: i32) -> (i32, i32) {
    %c0_i32 = arith.constant 0 : i32
    %c0_i32_0 = arith.constant 0 : i32
    return %c0_i32, %arg1 : i32, i32
  }
  func.func @transform_3(%arg0: i32, %arg1: i32) -> (i32, i32) {
    %c0_i32 = arith.constant 0 : i32
    %c0_i32_0 = arith.constant 0 : i32
    return %arg0, %c0_i32 : i32, i32
  }
}

</mosaic_0001>

<llo_original>
// kernel: tpu_custom_call.1
$region0: #{tpu_custom_call.1}
  #allocation0 [shape = 'u32[]', space=smem, size = 0x4, offset = 0x4, fixed_abs, tag = 'smem constant byte address 0x4 - core index']
  #allocation1 [shape = 'u32[72,128]{1,0:T(1,128)}', space=vmem, size = 0x9000, scoped, tag = 'internal scratch']
  #allocation2 [shape = 'f32[8,1]{1,0:T(8,128)}', space=vmem, size = 0x1000, scoped, tag = 'scratch operand']
  #allocation3 [shape = 'f32[8,1]{1,0:T(8,128)}', space=vmem, size = 0x1000, scoped, tag = 'scratch operand']
  %s0 = inlined_call_operand.hbm [shape: f32[8,32], index: 0, kind: input, shape index: {}]
  %s1 = inlined_call_operand.hbm [shape: f32[32,128], index: 1, kind: input, shape index: {}]
  %s2 = inlined_call_operand.vmem [shape: f32[1,128], index: 2, kind: input, shape index: {}]
  %s3 = inlined_call_operand.hbm [shape: f32[8,128], index: 3, kind: output, shape index: {}]
  %s4 = sld [smem:[#allocation0]]
  $region38: #{tpu_custom_call.1} parent=0
    _
  %s6 = ssub.s32 1, %s4
  %s7 = scalar_select 0, %s6, %s4
  $region1: #{tpu_custom_call.1} parent=0
    #allocation4 [shape = 'u8[4096]{0}', space=vmem, size = 0x1000, scoped, tag = 'input window, operand 0, single buffered']
    #allocation5 [shape = 's32[1]{0}', space=sflag, size = 0x4, scoped, tag = 'scoped memory for tpu_custom_call.1']
    #allocation6 [shape = 's32[1]{0}', space=sflag, size = 0x4, scoped, tag = 'scoped memory for tpu_custom_call.1']
    #allocation7 [shape = 'u8[16384]{0}', space=vmem, size = 0x4000, scoped, tag = 'input window, operand 1, single buffered']
    #allocation8 [shape = 's32[1]{0}', space=sflag, size = 0x4, scoped, tag = 'scoped memory for tpu_custom_call.1']
    #allocation9 [shape = 'u8[4096]{0}', space=vmem, size = 0x1000, scoped, tag = 'output window, operand 0, single buffered']
    %8 = vsyncpa [#allocation5], 0
    %9 = vsyncpa [#allocation8], 0
    %10 = vsyncpa [#allocation6], 0
    // Predicated region
    $region2: #{tpu_custom_call.1} parent=1 // pred_check
      _
    $region3: #{tpu_custom_call.1} parent=1 // pred_check_branch
      %12 = sbr.rel (0) target = $region5
    $region4: #{tpu_custom_call.1} parent=1 // pred_region
      %14 = vsyncadd [#allocation5], 0
      %s16 = sshll.u32 %s0, 4
      %s17 = int_to_ptr.hbm [resolvable:$true] %s16
      %s18 = sshll.u32 [#allocation4], 4
      %s19 = int_to_ptr.vmem [resolvable:$true] %s18
      %21 = dma.hbm_to_vmem [thread:$0]  %s17, 128, %s19, [#allocation5]
    $region5: #{tpu_custom_call.1} parent=1 // pred_fallthru
      _
    // Predicated region
    $region6: #{tpu_custom_call.1} parent=1 // pred_check
      _
    $region7: #{tpu_custom_call.1} parent=1 // pred_check_branch
      %23 = sbr.rel (0) target = $region9
    $region8: #{tpu_custom_call.1} parent=1 // pred_region
      %25 = vsyncadd [#allocation8], 0
      %s26 = sshll.u32 %s1, 4
      %s27 = int_to_ptr.hbm [resolvable:$true] %s26
      %s28 = sshll.u32 [#allocation7], 4
      %s29 = int_to_ptr.vmem [resolvable:$true] %s28
      %34 = dma.hbm_to_vmem [thread:$0]  %s27, 512, %s29, [#allocation8], 128, 128, 8
    $region9: #{tpu_custom_call.1} parent=1 // pred_fallthru
      _
    // Predicated region
    $region10: #{tpu_custom_call.1} parent=1 // pred_check
      _
    $region11: #{tpu_custom_call.1} parent=1 // pred_check_branch
      %36 = sbr.rel (0) target = $region13
    $region12: #{tpu_custom_call.1} parent=1 // pred_region
      _
    $region13: #{tpu_custom_call.1} parent=1 // pred_fallthru
      _
    // Predicated region
    $region14: #{tpu_custom_call.1} parent=1 // pred_check
      _
    $region15: #{tpu_custom_call.1} parent=1 // pred_check_branch
      %38 = sbr.rel (0) target = $region17
    $region16: #{tpu_custom_call.1} parent=1 // pred_region
      %40 = dma.done [#allocation5], 128
    $region17: #{tpu_custom_call.1} parent=1 // pred_fallthru
      _
    // Predicated region
    $region18: #{tpu_custom_call.1} parent=1 // pred_check
      _
    $region19: #{tpu_custom_call.1} parent=1 // pred_check_branch
      %42 = sbr.rel (0) target = $region21
    $region20: #{tpu_custom_call.1} parent=1 // pred_region
      %44 = dma.done [#allocation8], 512
    $region21: #{tpu_custom_call.1} parent=1 // pred_fallthru
      _
    %p45 = scmp.eq.s32.totalorder 0, 0
    // Predicated region
    $region22: #{tpu_custom_call.1} parent=1 // pred_check
      %p46 = pneg %p45
    $region23: #{tpu_custom_call.1} parent=1 // pred_check_branch
      %48 = sbr.rel (%p46) target = $region25
    $region24: #{tpu_custom_call.1} parent=1 // pred_region
      %vm49 = vcmask 7168
      %50 = vst.msk [vmem:[#allocation2] sm:$0xff] %vm49, -inf
      %51 = vst.msk [vmem:[#allocation3] sm:$0xff] %vm49, 0.0
    $region25: #{tpu_custom_call.1} parent=1 // pred_fallthru
      _
    %v52 = vld [vmem:[#allocation4] sm:$0xff]
    %v53 = vld [vmem:[#allocation7] sm:$0xff]
    %v54 = vld [vmem:[#allocation7 + $0x8] sm:$0xff]
    %v55 = vld [vmem:[#allocation7 + $0x10] sm:$0xff]
    %v56 = vld [vmem:[#allocation7 + $0x18] sm:$0xff]
    %v57 = vld [vmem:[%s2] sm:$0x1]
    %v59 = vperm.slane %v57, 0
    %vm61 = vcmask 261120
    %v63 = vsel %vm61, %v52, 0
    %65 = vmatpush.msra.mxu0 0.0
    %66 = vmatpush.msra.mxu0 0.0
    %67 = vmatpush.msra.mxu0 0.0
    %68 = vmatpush.msra.mxu0 0.0
    %69 = vmatpush.msra.mxu0 0.0
    %70 = vmatpush.msra.mxu0 0.0
    %71 = vmatpush.msra.mxu0 0.0
    %72 = vmatpush.msra.mxu0 0.0
    %73 = vmatpush.msra.mxu0 0.0
    %74 = vmatpush.msra.mxu0 0.0
    %75 = vmatpush.msra.mxu0 0.0
    %76 = vmatpush.msra.mxu0 0.0
    %77 = vmatpush.msra.mxu0 %v56
    %78 = vmatpush.msra.mxu0 %v55
    %79 = vmatpush.msra.mxu0 %v54
    %80 = vmatpush.msra.mxu0 %v53
    %81 = vmatmul.f32.gmra.mxu0 %v63
    %v82 = vpop.f32.mrf.mxu0
    %v83 = vadd.f32 %v59, %v82
    %84 = vdwg.mxu0
    %v85 = vld [vmem:[#allocation2] sm:$0xff]
    %86 = vmax.xlane.f32.xlu0 %v83
    %v87 = vpop.xlane.xlu0 %86
    %v88 = vmax.f32 %v85, %v87
    %v89 = vld [vmem:[#allocation3] sm:$0xff]
    %v90 = vsub.f32 %v85, %v88
    %v91 = vmul.f32 %v90, 1.442695
    %v92 = vpow.pop %v91
    %v93 = vmul.f32 %v89, %v92
    %95 = vset.pattern.permute.xlu0 0
    %96 = vperm.xlu0 %95, %v88
    %v97 = vpop.permute.xlu0 %96
    %v99 = vsub.f32 %v83, %v97
    %v100 = vmul.f32 %v99, 1.442695
    %v101 = vpow.pop %v100
    %102 = vadd.xlane.f32.xlu0 %v101
    %v103 = vpop.xlane.xlu0 %102
    %v104 = vadd.f32 %v93, %v103
    %vm105 = vcmask 7168
    %106 = vst.msk [vmem:[#allocation3] sm:$0xff] %vm105, %v104
    %107 = vst.msk [vmem:[#allocation2] sm:$0xff] %vm105, %v88
    %108 = vst [vmem:[#allocation9] sm:$0xff] %v83
    // Predicated region
    $region26: #{tpu_custom_call.1} parent=1 // pred_check
      %p109 = pneg %p45
    $region27: #{tpu_custom_call.1} parent=1 // pred_check_branch
      %111 = sbr.rel (%p109) target = $region29
    $region28: #{tpu_custom_call.1} parent=1 // pred_region
      %v112 = vld [vmem:[#allocation2] sm:$0xff]
      %v113 = vld [vmem:[#allocation3] sm:$0xff]
      %v114 = vlog2.pop %v113
      %v115 = vmul.f32 %v114, 0.6931472
      %v116 = vadd.f32 %v112, %v115
      %v117 = vld [vmem:[#allocation9] sm:$0xff]
      %119 = vset.pattern.permute.xlu0 0
      %120 = vperm.xlu0 %119, %v116
      %v121 = vpop.permute.xlu0 %120
      %v123 = vsub.f32 %v117, %v121
      %124 = vst [vmem:[#allocation9] sm:$0xff] %v123
    $region29: #{tpu_custom_call.1} parent=1 // pred_fallthru
      _
    // Predicated region
    $region30: #{tpu_custom_call.1} parent=1 // pred_check
      _
    $region31: #{tpu_custom_call.1} parent=1 // pred_check_branch
      %126 = sbr.rel (0) target = $region33
    $region32: #{tpu_custom_call.1} parent=1 // pred_region
      %128 = vsyncadd [#allocation6], 0
      %s130 = sshll.u32 [#allocation9], 4
      %s131 = int_to_ptr.vmem [resolvable:$true] %s130
      %s132 = sshll.u32 %s3, 4
      %s133 = int_to_ptr.hbm [resolvable:$true] %s132
      %135 = dma.vmem_to_hbm [thread:$0]  %s131, 128, %s133, [#allocation6]
    $region33: #{tpu_custom_call.1} parent=1 // pred_fallthru
      _
    // Predicated region
    $region34: #{tpu_custom_call.1} parent=1 // pred_check
      _
    $region35: #{tpu_custom_call.1} parent=1 // pred_check_branch
      %137 = sbr.rel (0) target = $region37
    $region36: #{tpu_custom_call.1} parent=1 // pred_region
      %139 = dma.done [#allocation6], 128
    $region37: #{tpu_custom_call.1} parent=1 // pred_fallthru
      _
    %140 = vsyncpa [#allocation5], 1
    %141 = vsyncpa [#allocation8], 1
    %142 = vsyncpa [#allocation6], 1

</llo_original>
